<compile_context>
chip_gen: v7x
topology: tpu7x:2x2x1
jax: 0.10.0
libtpu: 0.0.40
codegen_flags: <defaults>
</compile_context>

<pallas_src>
import functools

import jax
import jax.numpy as jnp
from jax.experimental import pallas as pl
from jax.experimental.pallas import tpu as pltpu


def _round_up(x, m):
    return (x + m - 1) // m * m


def _next_pow2(x):
    return 1 << (max(int(x), 1) - 1).bit_length()


# ----------------------------------------------------------------------------
# Pallas kernel: fused 3-layer MLP  (Linear -> ReLU -> Linear -> ReLU -> Linear)
# ----------------------------------------------------------------------------
def _mlp_kernel(obs_ref, act_ref, w1_ref, b1_ref, w2_ref, b2_ref, w3_ref,
                b3_ref, o_ref, x_ref, *, obs_dims):
    # Build the lane-padded input tile entirely in VMEM: zero the scratch, then
    # drop obs / act into their columns.  Padded columns are zero (and W1's
    # padded rows are zero too), so they are inert through the network.
    # Zeroing every step keeps this safe under megacore grid sharding.
    x_ref[...] = jnp.zeros_like(x_ref)
    x_ref[:, :obs_dims] = obs_ref[...]
    x_ref[:, obs_dims:obs_dims + 1] = act_ref[...]

    cdt = w1_ref.dtype                        # f32 default, bf16 opt-in
    x = x_ref[...].astype(cdt)
    h1 = jnp.dot(x, w1_ref[...], preferred_element_type=jnp.float32)
    h1 = jnp.maximum(h1 + b1_ref[...], 0.0)   # bias + ReLU in f32
    h2 = jnp.dot(h1.astype(cdt), w2_ref[...], preferred_element_type=jnp.float32)
    h2 = jnp.maximum(h2 + b2_ref[...], 0.0)
    y = jnp.dot(h2.astype(cdt), w3_ref[...], preferred_element_type=jnp.float32)
    o_ref[...] = (y + b3_ref[...]).astype(o_ref.dtype)


def _mlp_pallas(obs_p, act_p, w1_p, b1_p, w2_p, b2_p, w3_p, b3_p, tile_b):
    """obs_p: (Bp, obs_dims), act_p: (Bp, 1); weights/biases already padded."""
    Bp, obs_dims = obs_p.shape
    INp, F1p = w1_p.shape
    F2p = w2_p.shape[1]
    OUTp = w3_p.shape[1]
    grid = (Bp // tile_b,)

    w_bytes = w1_p.dtype.itemsize
    flops = 2 * Bp * (INp * F1p + F1p * F2p + F2p * OUTp)
    bytes_accessed = (4 * Bp * (obs_dims + 1 + OUTp)
                      + w_bytes * (INp * F1p + F1p * F2p + F2p * OUTp)
                      + 4 * (F1p + F2p + OUTp))

    kernel = functools.partial(_mlp_kernel, obs_dims=obs_dims)

    # Weight/bias index_maps are constant -> DMA'd once, VMEM-resident across
    # the batch grid.  Only obs/act tiles stream in and out tiles stream back.
    return pl.pallas_call(
        kernel,
        out_shape=jax.ShapeDtypeStruct((Bp, OUTp), jnp.float32),
        grid=grid,
        in_specs=[
            pl.BlockSpec((tile_b, obs_dims), lambda i: (i, 0)),  # obs (compact)
            pl.BlockSpec((tile_b, 1), lambda i: (i, 0)),         # act (compact)
            pl.BlockSpec((INp, F1p), lambda i: (0, 0)),          # W1 (resident)
            pl.BlockSpec((1, F1p), lambda i: (0, 0)),            # b1
            pl.BlockSpec((F1p, F2p), lambda i: (0, 0)),          # W2
            pl.BlockSpec((1, F2p), lambda i: (0, 0)),            # b2
            pl.BlockSpec((F2p, OUTp), lambda i: (0, 0)),         # W3
            pl.BlockSpec((1, OUTp), lambda i: (0, 0)),           # b3
        ],
        out_specs=pl.BlockSpec((tile_b, OUTp), lambda i: (i, 0)),
        scratch_shapes=[pltpu.VMEM((tile_b, INp), jnp.float32)],
        compiler_params=pltpu.CompilerParams(
            dimension_semantics=("parallel",),     # batch axis -> megacore
        ),
        cost_estimate=pl.CostEstimate(
            flops=flops, transcendentals=0, bytes_accessed=bytes_accessed),
    )(obs_p, act_p, w1_p, b1_p, w2_p, b2_p, w3_p, b3_p)


@functools.partial(jax.jit, static_argnames=("tile_b", "out_dim"))
def _dynamics_forward(obs_p, act_p, w1_p, b1_p, w2_p, b2_p, w3_p, b3_p,
                      *, tile_b, out_dim):
    """Kernel + column-slice + split + cast, fused in one jit.

    Inputs are already row-padded to the bucketed batch size, so this function
    only ever sees a small set of shapes (no per-batch-size recompiles).
    """
    out_p = _mlp_pallas(obs_p, act_p, w1_p, b1_p, w2_p, b2_p, w3_p, b3_p,
                        tile_b)
    out = out_p[:, :out_dim]                  # lane-dense kernel store, sliced here
    obs_ = out[:, :-2]
    rew = out[:, -2]
    done = out[:, -1].astype(jnp.int32)       # torch .long(); int32 unless x64
    return obs_, rew, done


# ----------------------------------------------------------------------------
# DynamicsModel wrapper (parameter init + forward splitting, plain JAX glue)
# ----------------------------------------------------------------------------
class DynamicsModel:
    # The torch module's Adam optimizer / lr / name / .to(device) are
    # training-time state, not part of the forward pass, and are omitted here.
    def __init__(self, lr, obs_dims, act_dims, fc1_dims, fc2_dims, name=None,
                 *, key=None, use_bf16=False):
        del lr, name
        if key is None:
            key = jax.random.PRNGKey(0)
        self.obs_dims = obs_dims
        self.act_dims = act_dims
        in_dim = obs_dims + act_dims
        out_dim = obs_dims + 2
        self.in_dim, self.out_dim = in_dim, out_dim
        ks = jax.random.split(key, 6)

        def linear_init(kw, kb, fan_in, fan_out):
            # Matches torch.nn.Linear default: U(-1/sqrt(fan_in), 1/sqrt(fan_in))
            bound = 1.0 / jnp.sqrt(jnp.float32(fan_in))
            w = jax.random.uniform(kw, (fan_in, fan_out), jnp.float32, -bound, bound)
            b = jax.random.uniform(kb, (fan_out,), jnp.float32, -bound, bound)
            return w, b

        # Weights stored as (in_features, out_features) so each layer is x@W+b.
        self.w1, self.b1 = linear_init(ks[0], ks[1], in_dim, fc1_dims)
        self.w2, self.b2 = linear_init(ks[2], ks[3], fc1_dims, fc2_dims)
        self.w3, self.b3 = linear_init(ks[4], ks[5], fc2_dims, out_dim)

        # Pad parameters ONCE at construction (lane dims -> multiples of 128).
        INp = _round_up(in_dim, 128)
        F1p = _round_up(fc1_dims, 128)
        F2p = _round_up(fc2_dims, 128)
        OUTp = _round_up(out_dim, 128)

        def pad2(a, rows, cols):
            return jnp.pad(a, ((0, rows - a.shape[0]), (0, cols - a.shape[1])))

        wdt = jnp.bfloat16 if use_bf16 else jnp.float32   # bf16 opt-in (v6e/v7x)
        self._w1p = pad2(self.w1, INp, F1p).astype(wdt)
        self._w2p = pad2(self.w2, F1p, F2p).astype(wdt)
        self._w3p = pad2(self.w3, F2p, OUTp).astype(wdt)
        self._b1p = pad2(self.b1.reshape(1, -1), 1, F1p)   # biases stay f32
        self._b2p = pad2(self.b2.reshape(1, -1), 1, F2p)
        self._b3p = pad2(self.b3.reshape(1, -1), 1, OUTp)

    @staticmethod
    def _pick_dims(batch):
        """Bucket the batch to a power of two and choose the row tile:
           * Bp <= 512   : single program (zero per-step overhead),
           * Bp <= 4096  : two tiles (512..2048 rows) -> both TCs on v7x,
           * larger      : 2048-row tiles (inside v5e's default scoped VMEM)."""
        b_pad = max(8, _next_pow2(batch))
        if b_pad <= 512:
            tile = b_pad
        elif b_pad <= 4096:
            tile = b_pad // 2
        else:
            tile = 2048
        return b_pad, tile

    def forward(self, observation, action):
        obs = jnp.asarray(observation, dtype=jnp.float32)
        act = jnp.asarray(action, dtype=jnp.float32)
        act = act.reshape(*act.shape, 1)                 # (...,) -> (..., 1)

        squeeze = obs.ndim == 1                          # single-sample path
        if squeeze:
            obs = obs[None, :]
            act = act[None, :]

        B = obs.shape[0]
        b_pad, tile_b = self._pick_dims(B)
        if b_pad != B:
            # Row padding only (~68 B/row) -- not the old 128-lane HBM buffer.
            obs = jnp.pad(obs, ((0, b_pad - B), (0, 0)))
            act = jnp.pad(act, ((0, b_pad - B), (0, 0)))

        obs_, rew, done = _dynamics_forward(
            obs, act, self._w1p, self._b1p, self._w2p, self._b2p,
            self._w3p, self._b3p, tile_b=tile_b, out_dim=self.out_dim)

        if squeeze:
            return obs_[0], rew[0], done[0]
        # Lazy row-slice of the bucketed outputs (tiny copies, keeps the jit
        # specialized only on bucketed shapes -> no per-batch-size recompiles).
        return obs_[:B], rew[:B], done[:B]


# ----------------------------------------------------------------------------
if __name__ == "__main__":
    key = jax.random.PRNGKey(0)
    k_param, k_obs, k_act, k_obs2, k_act2 = jax.random.split(key, 5)

    obs_dims, act_dims = 16, 1
    fc1_dims, fc2_dims = 32, 32
    batch = 2

    model = DynamicsModel(1e-3, obs_dims, act_dims, fc1_dims, fc2_dims,
                          key=k_param)

    observation = jax.random.normal(k_obs, (batch, obs_dims), jnp.float32)
    action = jax.random.normal(k_act, (batch,), jnp.float32)

    # Batched path (single-program kernel, Bp=8).
    obs_, rew, done = model.forward(observation, action)
    jax.block_until_ready((obs_, rew, done))

    def mlp_ref(x):
        h = jnp.maximum(x @ model.w1 + model.b1, 0.0)
        h = jnp.maximum(h @ model.w2 + model.b2, 0.0)
        return h @ model.w3 + model.b3

    y_ref = mlp_ref(jnp.concatenate((observation, action[:, None]), axis=-1))
    assert obs_.shape == (batch, obs_dims)
    assert rew.shape == (batch,) and done.shape == (batch,)
    assert done.dtype == jnp.int32
    assert jnp.allclose(obs_, y_ref[:, :-2], atol=1e-5)
    assert jnp.allclose(rew, y_ref[:, -2], atol=1e-5)

    # Larger non-power-of-two batch -> exercises row padding + 2-tile grid
    # (Bp=1024, tile_b=512, parallel batch axis).
    big = 600
    obs_b = jax.random.normal(k_obs2, (big, obs_dims), jnp.float32)
    act_b = jax.random.normal(k_act2, (big,), jnp.float32)
    ob2, rw2, dn2 = model.forward(obs_b, act_b)
    jax.block_until_ready((ob2, rw2, dn2))
    y_ref2 = mlp_ref(jnp.concatenate((obs_b, act_b[:, None]), axis=-1))
    assert ob2.shape == (big, obs_dims) and rw2.shape == (big,)
    assert jnp.allclose(ob2, y_ref2[:, :-2], atol=1e-5)
    assert jnp.allclose(rw2, y_ref2[:, -2], atol=1e-5)

    # Single-sample (1-D) path, matching torch's `len(output.shape)==1` branch.
    o1, r1, d1 = model.forward(observation[0], action[0])
    jax.block_until_ready((o1, r1, d1))
    assert o1.shape == (obs_dims,) and r1.shape == () and d1.shape == ()
    assert jnp.allclose(o1, y_ref[0, :-2], atol=1e-5)
    assert jnp.allclose(r1, y_ref[0, -2], atol=1e-5)

    print("KERNEL_OK")
</pallas_src>

<mosaic_0001>
module attributes {stable_mosaic.version = 11 : i64} {
  func.func @_mlp_kernel(%arg0: i32, %arg1: memref<8x16xf32, #tpu.memory_space<vmem>>, %arg2: memref<8x1xf32, #tpu.memory_space<vmem>>, %arg3: memref<128x128xf32, #tpu.memory_space<vmem>>, %arg4: memref<1x128xf32, #tpu.memory_space<vmem>>, %arg5: memref<128x128xf32, #tpu.memory_space<vmem>>, %arg6: memref<1x128xf32, #tpu.memory_space<vmem>>, %arg7: memref<128x128xf32, #tpu.memory_space<vmem>>, %arg8: memref<1x128xf32, #tpu.memory_space<vmem>>, %arg9: memref<8x128xf32, #tpu.memory_space<vmem>>, %arg10: memref<8x128xf32, #tpu.memory_space<vmem>>) attributes {dimension_semantics = [#tpu.dimension_semantics<parallel>], iteration_bounds = array<i64: 1>, scalar_prefetch = 0 : i64, scratch_operands = 1 : i64, tpu.core_type = #tpu.core_type<tc>, window_params = [{transform_indices = @transform_0, window_bounds = array<i64: 8, 16>}, {transform_indices = @transform_1, window_bounds = array<i64: 8, 1>}, {pipeline_mode = #tpu.pipeline_mode<synchronous>, transform_indices = @transform_2, window_bounds = array<i64: 128, 128>}, {pipeline_mode = #tpu.pipeline_mode<synchronous>, transform_indices = @transform_3, window_bounds = array<i64: 1, 128>}, {pipeline_mode = #tpu.pipeline_mode<synchronous>, transform_indices = @transform_4, window_bounds = array<i64: 128, 128>}, {pipeline_mode = #tpu.pipeline_mode<synchronous>, transform_indices = @transform_5, window_bounds = array<i64: 1, 128>}, {pipeline_mode = #tpu.pipeline_mode<synchronous>, transform_indices = @transform_6, window_bounds = array<i64: 128, 128>}, {pipeline_mode = #tpu.pipeline_mode<synchronous>, transform_indices = @transform_7, window_bounds = array<i64: 1, 128>}, {transform_indices = @transform_8, window_bounds = array<i64: 8, 128>}]} {
    %cst = arith.constant 0.000000e+00 : f32
    %0 = vector.broadcast %cst : f32 to vector<8x128xf32>
    %c0 = arith.constant 0 : index
    %c0_0 = arith.constant 0 : index
    %1 = vector.load %arg10[%c0, %c0_0] : memref<8x128xf32, #tpu.memory_space<vmem>>, vector<8x128xf32>
    tpu.vector_store %arg10[%c0, %c0_0], %0 {strides = array<i32>} : memref<8x128xf32, #tpu.memory_space<vmem>>, vector<8x128xf32>,
    %c0_1 = arith.constant 0 : index
    %c0_2 = arith.constant 0 : index
    %2 = vector.load %arg1[%c0_1, %c0_2] : memref<8x16xf32, #tpu.memory_space<vmem>>, vector<8x16xf32>
    %c0_3 = arith.constant 0 : index
    %c0_4 = arith.constant 0 : index
    %3 = vector.load %arg10[%c0_3, %c0_4] : memref<8x128xf32, #tpu.memory_space<vmem>>, vector<8x16xf32>
    tpu.vector_store %arg10[%c0_3, %c0_4], %2 {strides = array<i32>} : memref<8x128xf32, #tpu.memory_space<vmem>>, vector<8x16xf32>,
    %c0_5 = arith.constant 0 : index
    %c0_6 = arith.constant 0 : index
    %4 = vector.load %arg2[%c0_5, %c0_6] : memref<8x1xf32, #tpu.memory_space<vmem>>, vector<8x1xf32>
    %c0_7 = arith.constant 0 : index
    %c16 = arith.constant 16 : index
    %5 = vector.load %arg10[%c0_7, %c16] : memref<8x128xf32, #tpu.memory_space<vmem>>, vector<8x1xf32>
    tpu.vector_store %arg10[%c0_7, %c16], %4 {strides = array<i32>} : memref<8x128xf32, #tpu.memory_space<vmem>>, vector<8x1xf32>,
    %c0_8 = arith.constant 0 : index
    %c0_9 = arith.constant 0 : index
    %6 = vector.load %arg10[%c0_8, %c0_9] : memref<8x128xf32, #tpu.memory_space<vmem>>, vector<8x128xf32>
    %c0_10 = arith.constant 0 : index
    %c0_11 = arith.constant 0 : index
    %7 = vector.load %arg3[%c0_10, %c0_11] : memref<128x128xf32, #tpu.memory_space<vmem>>, vector<128x128xf32>
    %cst_12 = arith.constant dense<0.000000e+00> : vector<8x128xf32>
    %8 = tpu.matmul %6, %7, %cst_12 {dimension_numbers = #tpu.dot_dimension_numbers<[1], [0], [0], [1], [0, 0, 1, 1], [], []>} : vector<8x128xf32>, vector<128x128xf32>, vector<8x128xf32> -> vector<8x128xf32>
    %c0_13 = arith.constant 0 : index
    %c0_14 = arith.constant 0 : index
    %9 = vector.load %arg4[%c0_13, %c0_14] : memref<1x128xf32, #tpu.memory_space<vmem>>, vector<1x128xf32>
    %10 = vector.broadcast %9 : vector<1x128xf32> to vector<8x128xf32>
    %11 = arith.addf %8, %10 : vector<8x128xf32>
    %cst_15 = arith.constant 0.000000e+00 : f32
    %12 = vector.broadcast %cst_15 : f32 to vector<8x128xf32>
    %13 = arith.maximumf %11, %12 : vector<8x128xf32>
    %c0_16 = arith.constant 0 : index
    %c0_17 = arith.constant 0 : index
    %14 = vector.load %arg5[%c0_16, %c0_17] : memref<128x128xf32, #tpu.memory_space<vmem>>, vector<128x128xf32>
    %cst_18 = arith.constant dense<0.000000e+00> : vector<8x128xf32>
    %15 = tpu.matmul %13, %14, %cst_18 {dimension_numbers = #tpu.dot_dimension_numbers<[1], [0], [0], [1], [0, 0, 1, 1], [], []>} : vector<8x128xf32>, vector<128x128xf32>, vector<8x128xf32> -> vector<8x128xf32>
    %c0_19 = arith.constant 0 : index
    %c0_20 = arith.constant 0 : index
    %16 = vector.load %arg6[%c0_19, %c0_20] : memref<1x128xf32, #tpu.memory_space<vmem>>, vector<1x128xf32>
    %17 = vector.broadcast %16 : vector<1x128xf32> to vector<8x128xf32>
    %18 = arith.addf %15, %17 : vector<8x128xf32>
    %cst_21 = arith.constant 0.000000e+00 : f32
    %19 = vector.broadcast %cst_21 : f32 to vector<8x128xf32>
    %20 = arith.maximumf %18, %19 : vector<8x128xf32>
    %c0_22 = arith.constant 0 : index
    %c0_23 = arith.constant 0 : index
    %21 = vector.load %arg7[%c0_22, %c0_23] : memref<128x128xf32, #tpu.memory_space<vmem>>, vector<128x128xf32>
    %cst_24 = arith.constant dense<0.000000e+00> : vector<8x128xf32>
    %22 = tpu.matmul %20, %21, %cst_24 {dimension_numbers = #tpu.dot_dimension_numbers<[1], [0], [0], [1], [0, 0, 1, 1], [], []>} : vector<8x128xf32>, vector<128x128xf32>, vector<8x128xf32> -> vector<8x128xf32>
    %c0_25 = arith.constant 0 : index
    %c0_26 = arith.constant 0 : index
    %23 = vector.load %arg8[%c0_25, %c0_26] : memref<1x128xf32, #tpu.memory_space<vmem>>, vector<1x128xf32>
    %24 = vector.broadcast %23 : vector<1x128xf32> to vector<8x128xf32>
    %25 = arith.addf %22, %24 : vector<8x128xf32>
    %c0_27 = arith.constant 0 : index
    %c0_28 = arith.constant 0 : index
    %26 = vector.load %arg9[%c0_27, %c0_28] : memref<8x128xf32, #tpu.memory_space<vmem>>, vector<8x128xf32>
    tpu.vector_store %arg9[%c0_27, %c0_28], %25 {strides = array<i32>} : memref<8x128xf32, #tpu.memory_space<vmem>>, vector<8x128xf32>,
    return
  }
  func.func @transform_0(%arg0: i32) -> (i32, i32) {
    %c0_i32 = arith.constant 0 : i32
    %c0_i32_0 = arith.constant 0 : i32
    return %arg0, %c0_i32 : i32, i32
  }
  func.func @transform_1(%arg0: i32) -> (i32, i32) {
    %c0_i32 = arith.constant 0 : i32
    %c0_i32_0 = arith.constant 0 : i32
    return %arg0, %c0_i32 : i32, i32
  }
  func.func @transform_2(%arg0: i32) -> (i32, i32) {
    %c0_i32 = arith.constant 0 : i32
    %c0_i32_0 = arith.constant 0 : i32
    %c0_i32_1 = arith.constant 0 : i32
    return %c0_i32, %c0_i32_0 : i32, i32
  }
  func.func @transform_3(%arg0: i32) -> (i32, i32) {
    %c0_i32 = arith.constant 0 : i32
    %c0_i32_0 = arith.constant 0 : i32
    %c0_i32_1 = arith.constant 0 : i32
    return %c0_i32, %c0_i32_0 : i32, i32
  }
  func.func @transform_4(%arg0: i32) -> (i32, i32) {
    %c0_i32 = arith.constant 0 : i32
    %c0_i32_0 = arith.constant 0 : i32
    %c0_i32_1 = arith.constant 0 : i32
    return %c0_i32, %c0_i32_0 : i32, i32
  }
  func.func @transform_5(%arg0: i32) -> (i32, i32) {
    %c0_i32 = arith.constant 0 : i32
    %c0_i32_0 = arith.constant 0 : i32
    %c0_i32_1 = arith.constant 0 : i32
    return %c0_i32, %c0_i32_0 : i32, i32
  }
  func.func @transform_6(%arg0: i32) -> (i32, i32) {
    %c0_i32 = arith.constant 0 : i32
    %c0_i32_0 = arith.constant 0 : i32
    %c0_i32_1 = arith.constant 0 : i32
    return %c0_i32, %c0_i32_0 : i32, i32
  }
  func.func @transform_7(%arg0: i32) -> (i32, i32) {
    %c0_i32 = arith.constant 0 : i32
    %c0_i32_0 = arith.constant 0 : i32
    %c0_i32_1 = arith.constant 0 : i32
    return %c0_i32, %c0_i32_0 : i32, i32
  }
  func.func @transform_8(%arg0: i32) -> (i32, i32) {
    %c0_i32 = arith.constant 0 : i32
    %c0_i32_0 = arith.constant 0 : i32
    return %arg0, %c0_i32 : i32, i32
  }
}

</mosaic_0001>

<llo_original>
// kernel: _dynamics_forward.1
$region0: #{_dynamics_forward.1}
  #allocation0 [shape = 'u32[]', space=smem, size = 0x4, offset = 0x4, fixed_abs, tag = 'smem constant byte address 0x4 - core index']
  #allocation1 [shape = 'u32[144,128]{1,0:T(1,128)}', space=vmem, size = 0x12000, scoped, tag = 'internal scratch']
  #allocation2 [shape = 'f32[8,128]{1,0:T(8,128)}', space=vmem, size = 0x1000, scoped, tag = 'scratch operand']
  %s0 = inlined_call_operand.vmem [shape: f32[8,16], index: 0, kind: input, shape index: {}]
  %s1 = inlined_call_operand.vmem [shape: f32[8,1], index: 1, kind: input, shape index: {}]
  %s2 = inlined_call_operand.hbm [shape: f32[128,128], index: 2, kind: input, shape index: {}]
  %s3 = inlined_call_operand.vmem [shape: f32[1,128], index: 3, kind: input, shape index: {}]
  %s4 = inlined_call_operand.hbm [shape: f32[128,128], index: 4, kind: input, shape index: {}]
  %s5 = inlined_call_operand.vmem [shape: f32[1,128], index: 5, kind: input, shape index: {}]
  %s6 = inlined_call_operand.hbm [shape: f32[128,128], index: 6, kind: input, shape index: {}]
  %s7 = inlined_call_operand.vmem [shape: f32[1,128], index: 7, kind: input, shape index: {}]
  %s8 = inlined_call_operand.vmem [shape: f32[8,128], index: 8, kind: output, shape index: {}]
  %s9 = sld [smem:[#allocation0]]
  $region54: #{_dynamics_forward.1} parent=0
    _
  %s11 = ssub.s32 1, %s9
  %s12 = scalar_select 0, %s11, %s9
  $region1: #{_dynamics_forward.1} parent=0
    #allocation3 [shape = 'u8[65536]{0}', space=vmem, size = 0x10000, scoped, tag = 'input window, operand 2, single buffered']
    #allocation4 [shape = 's32[1]{0}', space=sflag, size = 0x4, scoped, tag = 'scoped memory for _dynamics_forward.1']
    #allocation5 [shape = 'u8[65536]{0}', space=vmem, size = 0x10000, scoped, tag = 'input window, operand 4, single buffered']
    #allocation6 [shape = 's32[1]{0}', space=sflag, size = 0x4, scoped, tag = 'scoped memory for _dynamics_forward.1']
    #allocation7 [shape = 'u8[65536]{0}', space=vmem, size = 0x10000, scoped, tag = 'input window, operand 6, single buffered']
    %13 = vsyncpa [#allocation4], 0
    %14 = vsyncpa [#allocation6], 0
    // Predicated region
    $region2: #{_dynamics_forward.1} parent=1 // pred_check
      _
    $region3: #{_dynamics_forward.1} parent=1 // pred_check_branch
      %16 = sbr.rel (0) target = $region5
    $region4: #{_dynamics_forward.1} parent=1 // pred_region
      _
    $region5: #{_dynamics_forward.1} parent=1 // pred_fallthru
      _
    // Predicated region
    $region6: #{_dynamics_forward.1} parent=1 // pred_check
      _
    $region7: #{_dynamics_forward.1} parent=1 // pred_check_branch
      %18 = sbr.rel (0) target = $region9
    $region8: #{_dynamics_forward.1} parent=1 // pred_region
      _
    $region9: #{_dynamics_forward.1} parent=1 // pred_fallthru
      _
    // Predicated region
    $region10: #{_dynamics_forward.1} parent=1 // pred_check
      _
    $region11: #{_dynamics_forward.1} parent=1 // pred_check_branch
      %20 = sbr.rel (0) target = $region13
    $region12: #{_dynamics_forward.1} parent=1 // pred_region
      %s22 = ssub.s32 2048, 2048
      %23 = vsyncadd [#allocation4], %s22
      %s24 = sshll.u32 [#allocation3], 4
      %s25 = int_to_ptr.vmem [resolvable:$true] %s24
      %30 = dma.hbm_to_vmem [thread:$0]  %s2, 2048, %s25, [#allocation4], 128, 128, 8
    $region13: #{_dynamics_forward.1} parent=1 // pred_fallthru
      _
    // Predicated region
    $region14: #{_dynamics_forward.1} parent=1 // pred_check
      _
    $region15: #{_dynamics_forward.1} parent=1 // pred_check_branch
      %32 = sbr.rel (0) target = $region17
    $region16: #{_dynamics_forward.1} parent=1 // pred_region
      _
    $region17: #{_dynamics_forward.1} parent=1 // pred_fallthru
      _
    // Predicated region
    $region18: #{_dynamics_forward.1} parent=1 // pred_check
      _
    $region19: #{_dynamics_forward.1} parent=1 // pred_check_branch
      %34 = sbr.rel (0) target = $region21
    $region20: #{_dynamics_forward.1} parent=1 // pred_region
      %s36 = ssub.s32 2048, 2048
      %37 = vsyncadd [#allocation6], %s36
      %s38 = sshll.u32 [#allocation5], 4
      %s39 = int_to_ptr.vmem [resolvable:$true] %s38
      %44 = dma.hbm_to_vmem [thread:$0]  %s4, 2048, %s39, [#allocation6], 128, 128, 8
    $region21: #{_dynamics_forward.1} parent=1 // pred_fallthru
      _
    // Predicated region
    $region22: #{_dynamics_forward.1} parent=1 // pred_check
      _
    $region23: #{_dynamics_forward.1} parent=1 // pred_check_branch
      %46 = sbr.rel (0) target = $region25
    $region24: #{_dynamics_forward.1} parent=1 // pred_region
      _
    $region25: #{_dynamics_forward.1} parent=1 // pred_fallthru
      _
    // Predicated region
    $region26: #{_dynamics_forward.1} parent=1 // pred_check
      _
    $region27: #{_dynamics_forward.1} parent=1 // pred_check_branch
      %48 = sbr.rel (0) target = $region29
    $region28: #{_dynamics_forward.1} parent=1 // pred_region
      %s50 = ssub.s32 2048, 2048
      %51 = vsyncadd [#allocation6], %s50
      %s52 = sshll.u32 [#allocation7], 4
      %s53 = int_to_ptr.vmem [resolvable:$true] %s52
      %58 = dma.hbm_to_vmem [thread:$0]  %s6, 2048, %s53, [#allocation6], 128, 128, 8
    $region29: #{_dynamics_forward.1} parent=1 // pred_fallthru
      _
    // Predicated region
    $region30: #{_dynamics_forward.1} parent=1 // pred_check
      _
    $region31: #{_dynamics_forward.1} parent=1 // pred_check_branch
      %60 = sbr.rel (0) target = $region33
    $region32: #{_dynamics_forward.1} parent=1 // pred_region
      _
    $region33: #{_dynamics_forward.1} parent=1 // pred_fallthru
      _
    // Predicated region
    $region34: #{_dynamics_forward.1} parent=1 // pred_check
      _
    $region35: #{_dynamics_forward.1} parent=1 // pred_check_branch
      %62 = sbr.rel (0) target = $region37
    $region36: #{_dynamics_forward.1} parent=1 // pred_region
      %63 = dma.done [#allocation4], 2048
    $region37: #{_dynamics_forward.1} parent=1 // pred_fallthru
      _
    // Predicated region
    $region38: #{_dynamics_forward.1} parent=1 // pred_check
      _
    $region39: #{_dynamics_forward.1} parent=1 // pred_check_branch
      %65 = sbr.rel (0) target = $region41
    $region40: #{_dynamics_forward.1} parent=1 // pred_region
      %66 = dma.done [#allocation6], 2048
    $region41: #{_dynamics_forward.1} parent=1 // pred_fallthru
      _
    // Predicated region
    $region42: #{_dynamics_forward.1} parent=1 // pred_check
      _
    $region43: #{_dynamics_forward.1} parent=1 // pred_check_branch
      %68 = sbr.rel (0) target = $region45
    $region44: #{_dynamics_forward.1} parent=1 // pred_region
      %69 = dma.done [#allocation6], 2048
    $region45: #{_dynamics_forward.1} parent=1 // pred_fallthru
      _
    %70 = vst [vmem:[#allocation2] sm:$0xff] 0.0
    %v71 = vld [vmem:[%s0] sm:$0xff]
    %vm72 = vcmask 130048
    %73 = vst.msk [vmem:[#allocation2] sm:$0xff] %vm72, %v71
    %v74 = vld [vmem:[%s1] sm:$0xff]
    %76 = vrot.lane.b32.xlu0 %v74, 16
    %v77 = vpop.permute.xlu0 %76
    %vm79 = vcmask 138368
    %80 = vst.msk [vmem:[#allocation2] sm:$0xff] %vm79, %v77
    %v81 = vld [vmem:[#allocation2] sm:$0xff]
    %v82 = vld [vmem:[#allocation3] sm:$0xff]
    %v83 = vld [vmem:[#allocation3 + $0x8] sm:$0xff]
    %v84 = vld [vmem:[#allocation3 + $0x10] sm:$0xff]
    %v85 = vld [vmem:[#allocation3 + $0x18] sm:$0xff]
    %v86 = vld [vmem:[#allocation3 + $0x20] sm:$0xff]
    %v87 = vld [vmem:[#allocation3 + $0x28] sm:$0xff]
    %v88 = vld [vmem:[#allocation3 + $0x30] sm:$0xff]
    %v89 = vld [vmem:[#allocation3 + $0x38] sm:$0xff]
    %v90 = vld [vmem:[#allocation3 + $0x40] sm:$0xff]
    %v91 = vld [vmem:[#allocation3 + $0x48] sm:$0xff]
    %v92 = vld [vmem:[#allocation3 + $0x50] sm:$0xff]
    %v93 = vld [vmem:[#allocation3 + $0x58] sm:$0xff]
    %v94 = vld [vmem:[#allocation3 + $0x60] sm:$0xff]
    %v95 = vld [vmem:[#allocation3 + $0x68] sm:$0xff]
    %v96 = vld [vmem:[#allocation3 + $0x70] sm:$0xff]
    %v97 = vld [vmem:[#allocation3 + $0x78] sm:$0xff]
    %v98 = vld [vmem:[%s3] sm:$0x1]
    %v100 = vlaneseq
    %v101 = vshrl.u32 %v100, 7
    %v102 = vsub.s32 0, %v101
    %v103 = vrot.slane %v98, %v102
    %105 = vmatprep.subr.mxu0 0.0
    %106 = vmatpush1.msra.mxu0 %v82
    %107 = vmatprep.subr.mxu0 0.0
    %108 = vmatpush1.msra.mxu0 %v83
    %109 = vmatprep.subr.mxu0 0.0
    %110 = vmatpush1.msra.mxu0 %v84
    %111 = vmatprep.subr.mxu0 0.0
    %112 = vmatpush1.msra.mxu0 %v85
    %113 = vmatprep.subr.mxu0 0.0
    %114 = vmatpush1.msra.mxu0 %v86
    %115 = vmatprep.subr.mxu0 0.0
    %116 = vmatpush1.msra.mxu0 %v87
    %117 = vmatprep.subr.mxu0 0.0
    %118 = vmatpush1.msra.mxu0 %v88
    %119 = vmatprep.subr.mxu0 0.0
    %120 = vmatpush1.msra.mxu0 %v89
    %121 = vmatprep.subr.mxu0 0.0
    %122 = vmatpush1.msra.mxu0 %v90
    %123 = vmatprep.subr.mxu0 0.0
    %124 = vmatpush1.msra.mxu0 %v91
    %125 = vmatprep.subr.mxu0 0.0
    %126 = vmatpush1.msra.mxu0 %v92
    %127 = vmatprep.subr.mxu0 0.0
    %128 = vmatpush1.msra.mxu0 %v93
    %129 = vmatprep.subr.mxu0 0.0
    %130 = vmatpush1.msra.mxu0 %v94
    %131 = vmatprep.subr.mxu0 0.0
    %132 = vmatpush1.msra.mxu0 %v95
    %133 = vmatprep.subr.mxu0 0.0
    %134 = vmatpush1.msra.mxu0 %v96
    %135 = vmatprep.subr.mxu0 0.0
    %136 = vmatpush1.msra.mxu0 %v97
    %137 = vmatprep.subr.mxu0 0.0
    %138 = vmatpush1.msra.mxu0 0.0
    %139 = vmatprep.subr.mxu0 0.0
    %140 = vmatpush1.msra.mxu0 0.0
    %141 = vmatprep.subr.mxu0 0.0
    %142 = vmatpush1.msra.mxu0 0.0
    %143 = vmatprep.subr.mxu0 0.0
    %144 = vmatpush1.msra.mxu0 0.0
    %145 = vmatprep.subr.mxu0 0.0
    %146 = vmatpush1.msra.mxu0 0.0
    %147 = vmatprep.subr.mxu0 0.0
    %148 = vmatpush1.msra.mxu0 0.0
    %149 = vmatprep.subr.mxu0 0.0
    %150 = vmatpush1.msra.mxu0 0.0
    %151 = vmatprep.subr.mxu0 0.0
    %152 = vmatpush1.msra.mxu0 0.0
    %153 = vmatprep.subr.mxu0 0.0
    %154 = vmatpush1.msra.mxu0 0.0
    %155 = vmatprep.subr.mxu0 0.0
    %156 = vmatpush1.msra.mxu0 0.0
    %157 = vmatprep.subr.mxu0 0.0
    %158 = vmatpush1.msra.mxu0 0.0
    %159 = vmatprep.subr.mxu0 0.0
    %160 = vmatpush1.msra.mxu0 0.0
    %161 = vmatprep.subr.mxu0 0.0
    %162 = vmatpush1.msra.mxu0 0.0
    %163 = vmatprep.subr.mxu0 0.0
    %164 = vmatpush1.msra.mxu0 0.0
    %165 = vmatprep.subr.mxu0 0.0
    %166 = vmatpush1.msra.mxu0 0.0
    %167 = vmatprep.subr.mxu0 0.0
    %168 = vmatpush1.msra.mxu0 0.0
    %169 = vmatprep.mubr.f32.mxu0 0.0
    %170 = vmatmul.mubr.f32.gmra.mrb[0].mxu0 %v81
    %v171 = vpop.f32.mrb[0].mxu0
    %v172 = vadd.f32 %v103, %v171
    %v173 = vpop.f32.mrb[0].mxu0
    %174 = vdwg.mxu0
    %v175 = vmax.f32 %v172, 0.0
    %v176 = vld [vmem:[#allocation5] sm:$0xff]
    %v177 = vld [vmem:[#allocation5 + $0x8] sm:$0xff]
    %v178 = vld [vmem:[#allocation5 + $0x10] sm:$0xff]
    %v179 = vld [vmem:[#allocation5 + $0x18] sm:$0xff]
    %v180 = vld [vmem:[#allocation5 + $0x20] sm:$0xff]
    %v181 = vld [vmem:[#allocation5 + $0x28] sm:$0xff]
    %v182 = vld [vmem:[#allocation5 + $0x30] sm:$0xff]
    %v183 = vld [vmem:[#allocation5 + $0x38] sm:$0xff]
    %v184 = vld [vmem:[#allocation5 + $0x40] sm:$0xff]
    %v185 = vld [vmem:[#allocation5 + $0x48] sm:$0xff]
    %v186 = vld [vmem:[#allocation5 + $0x50] sm:$0xff]
    %v187 = vld [vmem:[#allocation5 + $0x58] sm:$0xff]
    %v188 = vld [vmem:[#allocation5 + $0x60] sm:$0xff]
    %v189 = vld [vmem:[#allocation5 + $0x68] sm:$0xff]
    %v190 = vld [vmem:[#allocation5 + $0x70] sm:$0xff]
    %v191 = vld [vmem:[#allocation5 + $0x78] sm:$0xff]
    %v192 = vld [vmem:[%s5] sm:$0x1]
    %v194 = vlaneseq
    %v195 = vshrl.u32 %v194, 7
    %v196 = vsub.s32 0, %v195
    %v197 = vrot.slane %v192, %v196
    %199 = vmatprep.subr.mxu0 0.0
    %200 = vmatpush1.msra.mxu0 %v176
    %201 = vmatprep.subr.mxu0 0.0
    %202 = vmatpush1.msra.mxu0 %v177
    %203 = vmatprep.subr.mxu0 0.0
    %204 = vmatpush1.msra.mxu0 %v178
    %205 = vmatprep.subr.mxu0 0.0
    %206 = vmatpush1.msra.mxu0 %v179
    %207 = vmatprep.subr.mxu0 0.0
    %208 = vmatpush1.msra.mxu0 %v180
    %209 = vmatprep.subr.mxu0 0.0
    %210 = vmatpush1.msra.mxu0 %v181
    %211 = vmatprep.subr.mxu0 0.0
    %212 = vmatpush1.msra.mxu0 %v182
    %213 = vmatprep.subr.mxu0 0.0
    %214 = vmatpush1.msra.mxu0 %v183
    %215 = vmatprep.subr.mxu0 0.0
    %216 = vmatpush1.msra.mxu0 %v184
    %217 = vmatprep.subr.mxu0 0.0
    %218 = vmatpush1.msra.mxu0 %v185
    %219 = vmatprep.subr.mxu0 0.0
    %220 = vmatpush1.msra.mxu0 %v186
    %221 = vmatprep.subr.mxu0 0.0
    %222 = vmatpush1.msra.mxu0 %v187
    %223 = vmatprep.subr.mxu0 0.0
    %224 = vmatpush1.msra.mxu0 %v188
    %225 = vmatprep.subr.mxu0 0.0
    %226 = vmatpush1.msra.mxu0 %v189
    %227 = vmatprep.subr.mxu0 0.0
    %228 = vmatpush1.msra.mxu0 %v190
    %229 = vmatprep.subr.mxu0 0.0
    %230 = vmatpush1.msra.mxu0 %v191
    %231 = vmatprep.subr.mxu0 0.0
    %232 = vmatpush1.msra.mxu0 0.0
    %233 = vmatprep.subr.mxu0 0.0
    %234 = vmatpush1.msra.mxu0 0.0
    %235 = vmatprep.subr.mxu0 0.0
    %236 = vmatpush1.msra.mxu0 0.0
    %237 = vmatprep.subr.mxu0 0.0
    %238 = vmatpush1.msra.mxu0 0.0
    %239 = vmatprep.subr.mxu0 0.0
    %240 = vmatpush1.msra.mxu0 0.0
    %241 = vmatprep.subr.mxu0 0.0
    %242 = vmatpush1.msra.mxu0 0.0
    %243 = vmatprep.subr.mxu0 0.0
    %244 = vmatpush1.msra.mxu0 0.0
    %245 = vmatprep.subr.mxu0 0.0
    %246 = vmatpush1.msra.mxu0 0.0
    %247 = vmatprep.subr.mxu0 0.0
    %248 = vmatpush1.msra.mxu0 0.0
    %249 = vmatprep.subr.mxu0 0.0
    %250 = vmatpush1.msra.mxu0 0.0
    %251 = vmatprep.subr.mxu0 0.0
    %252 = vmatpush1.msra.mxu0 0.0
    %253 = vmatprep.subr.mxu0 0.0
    %254 = vmatpush1.msra.mxu0 0.0
    %255 = vmatprep.subr.mxu0 0.0
    %256 = vmatpush1.msra.mxu0 0.0
    %257 = vmatprep.subr.mxu0 0.0
    %258 = vmatpush1.msra.mxu0 0.0
    %259 = vmatprep.subr.mxu0 0.0
    %260 = vmatpush1.msra.mxu0 0.0
    %261 = vmatprep.subr.mxu0 0.0
    %262 = vmatpush1.msra.mxu0 0.0
    %263 = vmatprep.mubr.f32.mxu0 0.0
    %264 = vmatmul.mubr.f32.gmra.mrb[0].mxu0 %v175
    %v265 = vpop.f32.mrb[0].mxu0
    %v266 = vadd.f32 %v197, %v265
    %v267 = vpop.f32.mrb[0].mxu0
    %268 = vdwg.mxu0
    %v269 = vmax.f32 %v266, 0.0
    %v270 = vld [vmem:[#allocation7] sm:$0xff]
    %v271 = vld [vmem:[#allocation7 + $0x8] sm:$0xff]
    %v272 = vld [vmem:[#allocation7 + $0x10] sm:$0xff]
    %v273 = vld [vmem:[#allocation7 + $0x18] sm:$0xff]
    %v274 = vld [vmem:[#allocation7 + $0x20] sm:$0xff]
    %v275 = vld [vmem:[#allocation7 + $0x28] sm:$0xff]
    %v276 = vld [vmem:[#allocation7 + $0x30] sm:$0xff]
    %v277 = vld [vmem:[#allocation7 + $0x38] sm:$0xff]
    %v278 = vld [vmem:[#allocation7 + $0x40] sm:$0xff]
    %v279 = vld [vmem:[#allocation7 + $0x48] sm:$0xff]
    %v280 = vld [vmem:[#allocation7 + $0x50] sm:$0xff]
    %v281 = vld [vmem:[#allocation7 + $0x58] sm:$0xff]
    %v282 = vld [vmem:[#allocation7 + $0x60] sm:$0xff]
    %v283 = vld [vmem:[#allocation7 + $0x68] sm:$0xff]
    %v284 = vld [vmem:[#allocation7 + $0x70] sm:$0xff]
    %v285 = vld [vmem:[#allocation7 + $0x78] sm:$0xff]
    %v286 = vld [vmem:[%s7] sm:$0x1]
    %v288 = vlaneseq
    %v289 = vshrl.u32 %v288, 7
    %v290 = vsub.s32 0, %v289
    %v291 = vrot.slane %v286, %v290
    %293 = vmatprep.subr.mxu0 0.0
    %294 = vmatpush1.msra.mxu0 %v270
    %295 = vmatprep.subr.mxu0 0.0
    %296 = vmatpush1.msra.mxu0 %v271
    %297 = vmatprep.subr.mxu0 0.0
    %298 = vmatpush1.msra.mxu0 %v272
    %299 = vmatprep.subr.mxu0 0.0
    %300 = vmatpush1.msra.mxu0 %v273
    %301 = vmatprep.subr.mxu0 0.0
    %302 = vmatpush1.msra.mxu0 %v274
    %303 = vmatprep.subr.mxu0 0.0
    %304 = vmatpush1.msra.mxu0 %v275
    %305 = vmatprep.subr.mxu0 0.0
    %306 = vmatpush1.msra.mxu0 %v276
    %307 = vmatprep.subr.mxu0 0.0
    %308 = vmatpush1.msra.mxu0 %v277
    %309 = vmatprep.subr.mxu0 0.0
    %310 = vmatpush1.msra.mxu0 %v278
    %311 = vmatprep.subr.mxu0 0.0
    %312 = vmatpush1.msra.mxu0 %v279
    %313 = vmatprep.subr.mxu0 0.0
    %314 = vmatpush1.msra.mxu0 %v280
    %315 = vmatprep.subr.mxu0 0.0
    %316 = vmatpush1.msra.mxu0 %v281
    %317 = vmatprep.subr.mxu0 0.0
    %318 = vmatpush1.msra.mxu0 %v282
    %319 = vmatprep.subr.mxu0 0.0
    %320 = vmatpush1.msra.mxu0 %v283
    %321 = vmatprep.subr.mxu0 0.0
    %322 = vmatpush1.msra.mxu0 %v284
    %323 = vmatprep.subr.mxu0 0.0
    %324 = vmatpush1.msra.mxu0 %v285
    %325 = vmatprep.subr.mxu0 0.0
    %326 = vmatpush1.msra.mxu0 0.0
    %327 = vmatprep.subr.mxu0 0.0
    %328 = vmatpush1.msra.mxu0 0.0
    %329 = vmatprep.subr.mxu0 0.0
    %330 = vmatpush1.msra.mxu0 0.0
    %331 = vmatprep.subr.mxu0 0.0
    %332 = vmatpush1.msra.mxu0 0.0
    %333 = vmatprep.subr.mxu0 0.0
    %334 = vmatpush1.msra.mxu0 0.0
    %335 = vmatprep.subr.mxu0 0.0
    %336 = vmatpush1.msra.mxu0 0.0
    %337 = vmatprep.subr.mxu0 0.0
    %338 = vmatpush1.msra.mxu0 0.0
    %339 = vmatprep.subr.mxu0 0.0
    %340 = vmatpush1.msra.mxu0 0.0
    %341 = vmatprep.subr.mxu0 0.0
    %342 = vmatpush1.msra.mxu0 0.0
    %343 = vmatprep.subr.mxu0 0.0
    %344 = vmatpush1.msra.mxu0 0.0
    %345 = vmatprep.subr.mxu0 0.0
    %346 = vmatpush1.msra.mxu0 0.0
    %347 = vmatprep.subr.mxu0 0.0
    %348 = vmatpush1.msra.mxu0 0.0
    %349 = vmatprep.subr.mxu0 0.0
    %350 = vmatpush1.msra.mxu0 0.0
    %351 = vmatprep.subr.mxu0 0.0
    %352 = vmatpush1.msra.mxu0 0.0
    %353 = vmatprep.subr.mxu0 0.0
    %354 = vmatpush1.msra.mxu0 0.0
    %355 = vmatprep.subr.mxu0 0.0
    %356 = vmatpush1.msra.mxu0 0.0
    %357 = vmatprep.mubr.f32.mxu0 0.0
    %358 = vmatmul.mubr.f32.gmra.mrb[0].mxu0 %v269
    %v359 = vpop.f32.mrb[0].mxu0
    %v360 = vadd.f32 %v291, %v359
    %v361 = vpop.f32.mrb[0].mxu0
    %362 = vdwg.mxu0
    %363 = vst [vmem:[%s8] sm:$0xff] %v360
    // Predicated region
    $region46: #{_dynamics_forward.1} parent=1 // pred_check
      _
    $region47: #{_dynamics_forward.1} parent=1 // pred_check_branch
      %365 = sbr.rel (0) target = $region49
    $region48: #{_dynamics_forward.1} parent=1 // pred_region
      _
    $region49: #{_dynamics_forward.1} parent=1 // pred_fallthru
      _
    // Predicated region
    $region50: #{_dynamics_forward.1} parent=1 // pred_check
      _
    $region51: #{_dynamics_forward.1} parent=1 // pred_check_branch
      %367 = sbr.rel (0) target = $region53
    $region52: #{_dynamics_forward.1} parent=1 // pred_region
      _
    $region53: #{_dynamics_forward.1} parent=1 // pred_fallthru
      _
    %368 = vsyncpa [#allocation4], 1
    %369 = vsyncpa [#allocation6], 1

</llo_original>
